<compile_context>
chip_gen: v7x
topology: tpu7x:2x2x1
jax: 0.10.0
libtpu: 0.0.40
codegen_flags: <defaults>
</compile_context>

<pallas_src>
import functools

import jax
import jax.numpy as jnp
from jax.experimental import pallas as pl
from jax.experimental.pallas import tpu as pltpu


def _round_up(n, m):
    return ((n + m - 1) // m) * m


def mlp_relu_kernel(x_ref, w1_ref, b1_ref, w2t_ref, b2c_ref, w3c_ref, b3_ref, o_ref):
    # Layer 1 (MXU): (bb, in) @ (in, u1) -> (bb, u1), f32 accumulation.
    h1 = jnp.dot(x_ref[...], w1_ref[...], preferred_element_type=jnp.float32)
    h1 = jnp.maximum(h1 + b1_ref[...], 0.0)

    # Layer 2 (MXU), computed transposed (contract last dim of both operands,
    # the standard A @ B^T pattern):  h2t[n, b] = sum_k w2t[n, k] * h1[b, k].
    # This makes the layer-3 result naturally lane-dense.
    h1c = h1.astype(w2t_ref.dtype)
    h2t = jnp.einsum("nk,bk->nb", w2t_ref[...], h1c,
                     preferred_element_type=jnp.float32)
    h2t = jnp.maximum(h2t + b2c_ref[...], 0.0)          # (u2, bb), f32

    # Layer 3 (out_features == 1): VPU multiply + sublane reduction instead of
    # an MXU matmul with a single useful output column.
    out = jnp.sum(h2t * w3c_ref[...], axis=0, keepdims=True) + b3_ref[...]  # (1, bb)
    o_ref[...] = out.reshape(1, 1, out.shape[-1]).astype(o_ref.dtype)


@functools.partial(jax.jit, static_argnames=("block_batch", "use_bf16"))
def deep_nn_relu_forward(x, w1, b1, w2, b2, w3, b3, *, block_batch=1024, use_bf16=True):
    """Forward pass of Deep_NN_relu.

    x:  (B, num_input)
    w1: (num_input, num_unit_1), b1: (1, num_unit_1)
    w2: (num_unit_1, num_unit_2), b2: (1, num_unit_2)
    w3: (num_unit_2, 1),          b3: (1, 1)
    returns (B, 1) in x.dtype
    """
    B, num_input = x.shape
    num_unit_1 = w1.shape[1]
    num_unit_2 = w2.shape[1]
    out_dtype = x.dtype
    compute_dtype = jnp.bfloat16 if use_bf16 else x.dtype

    # Lane-aligned batch tile; pad B up to a multiple of it (tail handled by
    # padding + trim instead of a hard divisibility assert).
    bb = _round_up(min(block_batch, _round_up(B, 128)), 128)
    padded_B = _round_up(B, bb)
    num_blocks = padded_B // bb

    x_p = jnp.pad(x, ((0, padded_B - B), (0, 0))).astype(compute_dtype)
    w1c = w1.astype(compute_dtype)                                 # (in, u1)
    b1r = b1.reshape(1, num_unit_1).astype(jnp.float32)            # (1, u1)
    w2t = jnp.transpose(w2).astype(compute_dtype)                  # (u2, u1)
    b2c = b2.reshape(num_unit_2, 1).astype(jnp.float32)            # (u2, 1)
    w3c = w3.reshape(num_unit_2, 1).astype(jnp.float32)            # (u2, 1)
    b3s = b3.reshape(1, 1).astype(jnp.float32)                     # (1, 1)

    out3 = pl.pallas_call(
        mlp_relu_kernel,
        out_shape=jax.ShapeDtypeStruct((num_blocks, 1, bb), out_dtype),
        grid_spec=pltpu.PrefetchScalarGridSpec(
            num_scalar_prefetch=0,
            grid=(num_blocks,),
            in_specs=[
                pl.BlockSpec((bb, num_input), lambda i: (i, 0)),          # x tile
                pl.BlockSpec((num_input, num_unit_1), lambda i: (0, 0)),  # w1
                pl.BlockSpec((1, num_unit_1), lambda i: (0, 0)),          # b1 row
                pl.BlockSpec((num_unit_2, num_unit_1), lambda i: (0, 0)), # w2^T
                pl.BlockSpec((num_unit_2, 1), lambda i: (0, 0)),          # b2 col
                pl.BlockSpec((num_unit_2, 1), lambda i: (0, 0)),          # w3 col
                pl.BlockSpec((1, 1), lambda i: (0, 0)),                   # b3
            ],
            out_specs=pl.BlockSpec((1, 1, bb), lambda i: (i, 0, 0)),
        ),
        compiler_params=pltpu.CompilerParams(
            dimension_semantics=("parallel",),
        ),
    )(x_p, w1c, b1r, w2t, b2c, w3c, b3s)

    return out3.reshape(padded_B)[:B].reshape(B, 1)


def init_linear_params(key, fan_in, fan_out, dtype=jnp.float32):
    """Deterministic init mimicking torch.nn.Linear default (uniform +/- 1/sqrt(fan_in))."""
    kw, kb = jax.random.split(key)
    bound = 1.0 / jnp.sqrt(fan_in)
    # Stored as (fan_in, fan_out) == transposed PyTorch weight, ready for x @ W.
    w = jax.random.uniform(kw, (fan_in, fan_out), dtype, minval=-bound, maxval=bound)
    b = jax.random.uniform(kb, (1, fan_out), dtype, minval=-bound, maxval=bound)
    return w, b


def reference_forward(x, w1, b1, w2, b2, w3, b3, use_bf16=True):
    cd = jnp.bfloat16 if use_bf16 else x.dtype
    h1 = jnp.maximum(
        jnp.dot(x.astype(cd), w1.astype(cd), preferred_element_type=jnp.float32) + b1, 0.0)
    h2 = jnp.maximum(
        jnp.dot(h1.astype(cd), w2.astype(cd), preferred_element_type=jnp.float32) + b2, 0.0)
    return (jnp.dot(h2, w3.astype(jnp.float32)) + b3).astype(x.dtype)


if __name__ == "__main__":
    # Small shapes consistent with Deep_NN_relu(num_input, num_unit_1, num_unit_2).
    # batch=300 deliberately exercises padding + a multi-block grid.
    batch, num_input, num_unit_1, num_unit_2 = 300, 32, 64, 32

    key = jax.random.PRNGKey(0)
    kx, k1, k2, k3 = jax.random.split(key, 4)

    x = jax.random.normal(kx, (batch, num_input), jnp.float32)
    w1, b1 = init_linear_params(k1, num_input, num_unit_1)
    w2, b2 = init_linear_params(k2, num_unit_1, num_unit_2)
    w3, b3 = init_linear_params(k3, num_unit_2, 1)

    # bf16-fed MXU path, 128-row tiles -> grid of 3 pipelined batch blocks.
    out_bf16 = deep_nn_relu_forward(x, w1, b1, w2, b2, w3, b3,
                                    block_batch=128, use_bf16=True)
    out_bf16 = jax.block_until_ready(out_bf16)
    ref_bf16 = reference_forward(x, w1, b1, w2, b2, w3, b3, use_bf16=True)
    assert out_bf16.shape == (batch, 1)
    assert jnp.allclose(out_bf16, ref_bf16, atol=2e-3, rtol=2e-3), \
        float(jnp.max(jnp.abs(out_bf16 - ref_bf16)))

    # Full f32 path with default tile size (single block here).
    out_f32 = deep_nn_relu_forward(x, w1, b1, w2, b2, w3, b3, use_bf16=False)
    out_f32 = jax.block_until_ready(out_f32)
    ref_f32 = reference_forward(x, w1, b1, w2, b2, w3, b3, use_bf16=False)
    assert out_f32.shape == (batch, 1)
    assert jnp.allclose(out_f32, ref_f32, atol=1e-5, rtol=1e-5), \
        float(jnp.max(jnp.abs(out_f32 - ref_f32)))

    print("KERNEL_OK")
</pallas_src>

<mosaic_0001>
module attributes {stable_mosaic.version = 11 : i64} {
  func.func @mlp_relu_kernel(%arg0: i32, %arg1: memref<128x32xbf16, #tpu.memory_space<vmem>>, %arg2: memref<32x64xbf16, #tpu.memory_space<vmem>>, %arg3: memref<1x64xf32, #tpu.memory_space<vmem>>, %arg4: memref<32x64xbf16, #tpu.memory_space<vmem>>, %arg5: memref<32x1xf32, #tpu.memory_space<vmem>>, %arg6: memref<32x1xf32, #tpu.memory_space<vmem>>, %arg7: memref<1x1xf32, #tpu.memory_space<vmem>>, %arg8: memref<1x1x128xf32, #tpu.memory_space<vmem>>) attributes {dimension_semantics = [#tpu.dimension_semantics<parallel>], iteration_bounds = array<i64: 3>, scalar_prefetch = 0 : i64, scratch_operands = 0 : i64, tpu.core_type = #tpu.core_type<tc>, window_params = [{transform_indices = @transform_0, window_bounds = array<i64: 128, 32>}, {pipeline_mode = #tpu.pipeline_mode<synchronous>, transform_indices = @transform_1, window_bounds = array<i64: 32, 64>}, {pipeline_mode = #tpu.pipeline_mode<synchronous>, transform_indices = @transform_2, window_bounds = array<i64: 1, 64>}, {pipeline_mode = #tpu.pipeline_mode<synchronous>, transform_indices = @transform_3, window_bounds = array<i64: 32, 64>}, {pipeline_mode = #tpu.pipeline_mode<synchronous>, transform_indices = @transform_4, window_bounds = array<i64: 32, 1>}, {pipeline_mode = #tpu.pipeline_mode<synchronous>, transform_indices = @transform_5, window_bounds = array<i64: 32, 1>}, {pipeline_mode = #tpu.pipeline_mode<synchronous>, transform_indices = @transform_6, window_bounds = array<i64: 1, 1>}, {transform_indices = @transform_7, window_bounds = array<i64: 1, 1, 128>}]} {
    %c0 = arith.constant 0 : index
    %c0_0 = arith.constant 0 : index
    %0 = vector.load %arg1[%c0, %c0_0] : memref<128x32xbf16, #tpu.memory_space<vmem>>, vector<128x32xbf16>
    %c0_1 = arith.constant 0 : index
    %c0_2 = arith.constant 0 : index
    %1 = vector.load %arg2[%c0_1, %c0_2] : memref<32x64xbf16, #tpu.memory_space<vmem>>, vector<32x64xbf16>
    %cst = arith.constant dense<0.000000e+00> : vector<128x64xf32>
    %2 = tpu.matmul %0, %1, %cst {dimension_numbers = #tpu.dot_dimension_numbers<[1], [0], [0], [1], [0, 0, 1, 1], [], []>} : vector<128x32xbf16>, vector<32x64xbf16>, vector<128x64xf32> -> vector<128x64xf32>
    %c0_3 = arith.constant 0 : index
    %c0_4 = arith.constant 0 : index
    %3 = vector.load %arg3[%c0_3, %c0_4] : memref<1x64xf32, #tpu.memory_space<vmem>>, vector<1x64xf32>
    %4 = vector.broadcast %3 : vector<1x64xf32> to vector<128x64xf32>
    %5 = arith.addf %2, %4 : vector<128x64xf32>
    %cst_5 = arith.constant 0.000000e+00 : f32
    %6 = vector.broadcast %cst_5 : f32 to vector<128x64xf32>
    %7 = arith.maximumf %5, %6 : vector<128x64xf32>
    %8 = arith.truncf %7 : vector<128x64xf32> to vector<128x64xbf16>
    %c0_6 = arith.constant 0 : index
    %c0_7 = arith.constant 0 : index
    %9 = vector.load %arg4[%c0_6, %c0_7] : memref<32x64xbf16, #tpu.memory_space<vmem>>, vector<32x64xbf16>
    "tpu.trace_start"() <{level = 10 : i32, message = "nk,bk->nb"}> : () -> ()
    %cst_8 = arith.constant dense<0.000000e+00> : vector<32x128xf32>
    %10 = tpu.matmul %9, %8, %cst_8 {dimension_numbers = #tpu.dot_dimension_numbers<[1], [1], [0], [0], [0, 0, 1, 0], [], []>} : vector<32x64xbf16>, vector<128x64xbf16>, vector<32x128xf32> -> vector<32x128xf32>
    "tpu.trace_stop"() : () -> ()
    %c0_9 = arith.constant 0 : index
    %c0_10 = arith.constant 0 : index
    %11 = vector.load %arg5[%c0_9, %c0_10] : memref<32x1xf32, #tpu.memory_space<vmem>>, vector<32x1xf32>
    %12 = vector.broadcast %11 : vector<32x1xf32> to vector<32x128xf32>
    %13 = arith.addf %10, %12 : vector<32x128xf32>
    %cst_11 = arith.constant 0.000000e+00 : f32
    %14 = vector.broadcast %cst_11 : f32 to vector<32x128xf32>
    %15 = arith.maximumf %13, %14 : vector<32x128xf32>
    %c0_12 = arith.constant 0 : index
    %c0_13 = arith.constant 0 : index
    %16 = vector.load %arg6[%c0_12, %c0_13] : memref<32x1xf32, #tpu.memory_space<vmem>>, vector<32x1xf32>
    %17 = vector.broadcast %16 : vector<32x1xf32> to vector<32x128xf32>
    %18 = arith.mulf %15, %17 : vector<32x128xf32>
    %cst_14 = arith.constant dense<0.000000e+00> : vector<128xf32>
    %19 = vector.multi_reduction <add>, %18, %cst_14 [0] : vector<32x128xf32> to vector<128xf32>
    %20 = vector.shape_cast %19 : vector<128xf32> to vector<1x128xf32>
    %c0_15 = arith.constant 0 : index
    %c0_16 = arith.constant 0 : index
    %21 = vector.load %arg7[%c0_15, %c0_16] : memref<1x1xf32, #tpu.memory_space<vmem>>, vector<1x1xf32>
    %22 = vector.broadcast %21 : vector<1x1xf32> to vector<1x128xf32>
    %23 = arith.addf %20, %22 : vector<1x128xf32>
    %24 = vector.shape_cast %23 : vector<1x128xf32> to vector<1x1x128xf32>
    %c0_17 = arith.constant 0 : index
    %c0_18 = arith.constant 0 : index
    %c0_19 = arith.constant 0 : index
    %25 = vector.load %arg8[%c0_17, %c0_18, %c0_19] : memref<1x1x128xf32, #tpu.memory_space<vmem>>, vector<1x1x128xf32>
    tpu.vector_store %arg8[%c0_17, %c0_18, %c0_19], %24 {strides = array<i32>} : memref<1x1x128xf32, #tpu.memory_space<vmem>>, vector<1x1x128xf32>,
    return
  }
  func.func @transform_0(%arg0: i32) -> (i32, i32) {
    %c0_i32 = arith.constant 0 : i32
    %c0_i32_0 = arith.constant 0 : i32
    return %arg0, %c0_i32 : i32, i32
  }
  func.func @transform_1(%arg0: i32) -> (i32, i32) {
    %c0_i32 = arith.constant 0 : i32
    %c0_i32_0 = arith.constant 0 : i32
    %c0_i32_1 = arith.constant 0 : i32
    return %c0_i32, %c0_i32_0 : i32, i32
  }
  func.func @transform_2(%arg0: i32) -> (i32, i32) {
    %c0_i32 = arith.constant 0 : i32
    %c0_i32_0 = arith.constant 0 : i32
    %c0_i32_1 = arith.constant 0 : i32
    return %c0_i32, %c0_i32_0 : i32, i32
  }
  func.func @transform_3(%arg0: i32) -> (i32, i32) {
    %c0_i32 = arith.constant 0 : i32
    %c0_i32_0 = arith.constant 0 : i32
    %c0_i32_1 = arith.constant 0 : i32
    return %c0_i32, %c0_i32_0 : i32, i32
  }
  func.func @transform_4(%arg0: i32) -> (i32, i32) {
    %c0_i32 = arith.constant 0 : i32
    %c0_i32_0 = arith.constant 0 : i32
    %c0_i32_1 = arith.constant 0 : i32
    return %c0_i32, %c0_i32_0 : i32, i32
  }
  func.func @transform_5(%arg0: i32) -> (i32, i32) {
    %c0_i32 = arith.constant 0 : i32
    %c0_i32_0 = arith.constant 0 : i32
    %c0_i32_1 = arith.constant 0 : i32
    return %c0_i32, %c0_i32_0 : i32, i32
  }
  func.func @transform_6(%arg0: i32) -> (i32, i32) {
    %c0_i32 = arith.constant 0 : i32
    %c0_i32_0 = arith.constant 0 : i32
    %c0_i32_1 = arith.constant 0 : i32
    return %c0_i32, %c0_i32_0 : i32, i32
  }
  func.func @transform_7(%arg0: i32) -> (i32, i32, i32) {
    %c0_i32 = arith.constant 0 : i32
    %c0_i32_0 = arith.constant 0 : i32
    %c0_i32_1 = arith.constant 0 : i32
    return %arg0, %c0_i32, %c0_i32_0 : i32, i32, i32
  }
}

</mosaic_0001>

<llo_original>
// kernel: deep_nn_relu_forward.1
$region0: #{deep_nn_relu_forward.1}
  #allocation0 [shape = 'u32[]', space=smem, size = 0x4, offset = 0x4, fixed_abs, tag = 'smem constant byte address 0x4 - core index']
  #allocation1 [shape = 'u32[144,128]{1,0:T(1,128)}', space=vmem, size = 0x12000, scoped, tag = 'internal scratch']
  #allocation2 [shape = 'f32[1,1]{1,0:T(1,128)S(1)}', space=vmem, size = 0x200, scoped, tag = 'scoped memory for deep_nn_relu_forward.1']
  %s0 = inlined_call_operand.vmem [shape: bf16[384,32], index: 0, kind: input, shape index: {}]
  %s1 = inlined_call_operand.vmem [shape: bf16[32,64], index: 1, kind: input, shape index: {}]
  %s2 = inlined_call_operand.vmem [shape: f32[1,64], index: 2, kind: input, shape index: {}]
  %s3 = inlined_call_operand.vmem [shape: bf16[32,64], index: 3, kind: input, shape index: {}]
  %s4 = inlined_call_operand.vmem [shape: f32[32,1], index: 4, kind: input, shape index: {}]
  %s5 = inlined_call_operand.vmem [shape: f32[32,1], index: 5, kind: input, shape index: {}]
  %s6 = inlined_call_operand.<no memory space> [shape: f32[1,1], index: 6, kind: input, shape index: {}]
  %s7 = inlined_call_operand.vmem [shape: f32[3,1,128], index: 7, kind: output, shape index: {}]
  %s8 = sld [smem:[#allocation0]]
  $region61: #{deep_nn_relu_forward.1} parent=0
    _
  %s10 = ssub.s32 1, %s8
  %s11 = scalar_select 0, %s10, %s8
  %v12 = vstv %s6
  %13 = vst [vmem:[#allocation2] sm:$0x1] %v12
  loop: start=0, step=1, limit=5
  $region2: #{deep_nn_relu_forward.1} parent=0 // loop_pre_header
    _
  $region3: #{deep_nn_relu_forward.1} parent=0 // loop_header
    %s15 = sphi 0, %s19
    %p16 = scmp.ge.s32.totalorder %s15, 5
    %s25 = sphi 0, %s27
    %s28 = sphi 0, %s25
    %s29 = sphi 0, %s28
    %s45 = sphi 0, %s29
    %s49 = sphi 0, %s49
    %s51 = sphi 0, %s49
    %s52 = sphi 0, %s51
    %s66 = sphi 0, %s52
    %s70 = sphi 0, %s70
    %s72 = sphi 0, %s70
    %s73 = sphi 0, %s72
    %s87 = sphi 0, %s73
    %s91 = sphi 0, %s91
    %s93 = sphi 0, %s91
    %s94 = sphi 0, %s93
    %s108 = sphi 0, %s94
    %s112 = sphi 0, %s112
    %s114 = sphi 0, %s112
    %s115 = sphi 0, %s114
    %s129 = sphi 0, %s115
    %s133 = sphi 0, %s133
    %s135 = sphi 0, %s133
    %s136 = sphi 0, %s135
    %s150 = sphi 0, %s136
    %s154 = sphi 0, %s154
    %s156 = sphi 0, %s154
    %s157 = sphi 0, %s156
    %s171 = sphi 0, %s157
    %s177 = sphi 0, %s179
    %s180 = sphi 0, %s177
    %s181 = sphi 0, %s180
    %s197 = sphi 0, %s181
  $region4: #{deep_nn_relu_forward.1} parent=0 // loop_header_branch
    %18 = sbr.rel (%p16) target = $region8
  $region5: #{deep_nn_relu_forward.1} parent=0 // loop_body
    %s20 = ssub.s32 %s15, 1
    %s21 = ssub.s32 %s15, 2
    %s22 = sadd.s32 %s15, 1
    %s23 = ssub.s32 %s15, %s22
    %p24 = scmp.eq.s32.totalorder %s23, 0
    %s26 = sadd.s32 %s25, 1
    %s27 = scalar_select %p24, %s25, %s26
    %p30 = pneg %p24
    %p31 = scmp.eq.s32.totalorder %s15, 2
    %p32 = por %p30, %p31
    %p33 = scmp.ne.s32.totalorder %s25, %s28
    %p34 = scmp.eq.s32.totalorder %s15, 0
    %p35 = por %p33, %p34
    %p36 = scmp.ne.s32.totalorder %s25, %s28
    %p37 = scmp.eq.s32.totalorder %s20, 2
    %p38 = por %p36, %p37
    %p39 = scmp.ne.s32.totalorder %s28, %s29
    %p40 = scmp.eq.s32.totalorder %s20, 0
    %p41 = por %p39, %p40
    %p42 = scmp.ne.s32.totalorder %s28, %s29
    %p43 = scmp.eq.s32.totalorder %s21, 2
    %p44 = por %p42, %p43
    %p46 = scmp.ne.s32.totalorder %s29, %s45
    %p47 = scmp.eq.s32.totalorder %s21, 0
    %p48 = por %p46, %p47
    %s50 = sadd.s32 %s49, 1
    %p53 = scmp.eq.s32.totalorder %s15, 2
    %p54 = scmp.ne.s32.totalorder %s49, %s51
    %p55 = scmp.eq.s32.totalorder %s15, 0
    %p56 = por %p54, %p55
    %p57 = scmp.ne.s32.totalorder %s49, %s51
    %p58 = scmp.eq.s32.totalorder %s20, 2
    %p59 = por %p57, %p58
    %p60 = scmp.ne.s32.totalorder %s51, %s52
    %p61 = scmp.eq.s32.totalorder %s20, 0
    %p62 = por %p60, %p61
    %p63 = scmp.ne.s32.totalorder %s51, %s52
    %p64 = scmp.eq.s32.totalorder %s21, 2
    %p65 = por %p63, %p64
    %p67 = scmp.ne.s32.totalorder %s52, %s66
    %p68 = scmp.eq.s32.totalorder %s21, 0
    %p69 = por %p67, %p68
    %s71 = sadd.s32 %s70, 1
    %p74 = scmp.eq.s32.totalorder %s15, 2
    %p75 = scmp.ne.s32.totalorder %s70, %s72
    %p76 = scmp.eq.s32.totalorder %s15, 0
    %p77 = por %p75, %p76
    %p78 = scmp.ne.s32.totalorder %s70, %s72
    %p79 = scmp.eq.s32.totalorder %s20, 2
    %p80 = por %p78, %p79
    %p81 = scmp.ne.s32.totalorder %s72, %s73
    %p82 = scmp.eq.s32.totalorder %s20, 0
    %p83 = por %p81, %p82
    %p84 = scmp.ne.s32.totalorder %s72, %s73
    %p85 = scmp.eq.s32.totalorder %s21, 2
    %p86 = por %p84, %p85
    %p88 = scmp.ne.s32.totalorder %s73, %s87
    %p89 = scmp.eq.s32.totalorder %s21, 0
    %p90 = por %p88, %p89
    %s92 = sadd.s32 %s91, 1
    %p95 = scmp.eq.s32.totalorder %s15, 2
    %p96 = scmp.ne.s32.totalorder %s91, %s93
    %p97 = scmp.eq.s32.totalorder %s15, 0
    %p98 = por %p96, %p97
    %p99 = scmp.ne.s32.totalorder %s91, %s93
    %p100 = scmp.eq.s32.totalorder %s20, 2
    %p101 = por %p99, %p100
    %p102 = scmp.ne.s32.totalorder %s93, %s94
    %p103 = scmp.eq.s32.totalorder %s20, 0
    %p104 = por %p102, %p103
    %p105 = scmp.ne.s32.totalorder %s93, %s94
    %p106 = scmp.eq.s32.totalorder %s21, 2
    %p107 = por %p105, %p106
    %p109 = scmp.ne.s32.totalorder %s94, %s108
    %p110 = scmp.eq.s32.totalorder %s21, 0
    %p111 = por %p109, %p110
    %s113 = sadd.s32 %s112, 1
    %p116 = scmp.eq.s32.totalorder %s15, 2
    %p117 = scmp.ne.s32.totalorder %s112, %s114
    %p118 = scmp.eq.s32.totalorder %s15, 0
    %p119 = por %p117, %p118
    %p120 = scmp.ne.s32.totalorder %s112, %s114
    %p121 = scmp.eq.s32.totalorder %s20, 2
    %p122 = por %p120, %p121
    %p123 = scmp.ne.s32.totalorder %s114, %s115
    %p124 = scmp.eq.s32.totalorder %s20, 0
    %p125 = por %p123, %p124
    %p126 = scmp.ne.s32.totalorder %s114, %s115
    %p127 = scmp.eq.s32.totalorder %s21, 2
    %p128 = por %p126, %p127
    %p130 = scmp.ne.s32.totalorder %s115, %s129
    %p131 = scmp.eq.s32.totalorder %s21, 0
    %p132 = por %p130, %p131
    %s134 = sadd.s32 %s133, 1
    %p137 = scmp.eq.s32.totalorder %s15, 2
    %p138 = scmp.ne.s32.totalorder %s133, %s135
    %p139 = scmp.eq.s32.totalorder %s15, 0
    %p140 = por %p138, %p139
    %p141 = scmp.ne.s32.totalorder %s133, %s135
    %p142 = scmp.eq.s32.totalorder %s20, 2
    %p143 = por %p141, %p142
    %p144 = scmp.ne.s32.totalorder %s135, %s136
    %p145 = scmp.eq.s32.totalorder %s20, 0
    %p146 = por %p144, %p145
    %p147 = scmp.ne.s32.totalorder %s135, %s136
    %p148 = scmp.eq.s32.totalorder %s21, 2
    %p149 = por %p147, %p148
    %p151 = scmp.ne.s32.totalorder %s136, %s150
    %p152 = scmp.eq.s32.totalorder %s21, 0
    %p153 = por %p151, %p152
    %s155 = sadd.s32 %s154, 1
    %p158 = scmp.eq.s32.totalorder %s15, 2
    %p159 = scmp.ne.s32.totalorder %s154, %s156
    %p160 = scmp.eq.s32.totalorder %s15, 0
    %p161 = por %p159, %p160
    %p162 = scmp.ne.s32.totalorder %s154, %s156
    %p163 = scmp.eq.s32.totalorder %s20, 2
    %p164 = por %p162, %p163
    %p165 = scmp.ne.s32.totalorder %s156, %s157
    %p166 = scmp.eq.s32.totalorder %s20, 0
    %p167 = por %p165, %p166
    %p168 = scmp.ne.s32.totalorder %s156, %s157
    %p169 = scmp.eq.s32.totalorder %s21, 2
    %p170 = por %p168, %p169
    %p172 = scmp.ne.s32.totalorder %s157, %s171
    %p173 = scmp.eq.s32.totalorder %s21, 0
    %p174 = por %p172, %p173
    %s175 = ssub.s32 %s15, %s22
    %p176 = scmp.eq.s32.totalorder %s175, 0
    %s178 = sadd.s32 %s177, 1
    %s179 = scalar_select %p176, %s177, %s178
    %p182 = pneg %p176
    %p183 = scmp.eq.s32.totalorder %s15, 2
    %p184 = por %p182, %p183
    %p185 = scmp.ne.s32.totalorder %s177, %s180
    %p186 = scmp.eq.s32.totalorder %s15, 0
    %p187 = por %p185, %p186
    %p188 = scmp.ne.s32.totalorder %s177, %s180
    %p189 = scmp.eq.s32.totalorder %s20, 2
    %p190 = por %p188, %p189
    %p191 = scmp.ne.s32.totalorder %s180, %s181
    %p192 = scmp.eq.s32.totalorder %s20, 0
    %p193 = por %p191, %p192
    %p194 = scmp.ne.s32.totalorder %s180, %s181
    %p195 = scmp.eq.s32.totalorder %s21, 2
    %p196 = por %p194, %p195
    %p198 = scmp.ne.s32.totalorder %s181, %s197
    %p199 = scmp.eq.s32.totalorder %s21, 0
    %p200 = por %p198, %p199
    %p201 = scmp.le.s32.totalorder 1, %s15
    %p202 = scmp.lt.s32.totalorder %s15, 4
    %p203 = pnand %p201, %p202
    %p204 = pneg %p203
    // Predicated region
    $region9: #{deep_nn_relu_forward.1} parent=5 // pred_check
      _
    $region10: #{deep_nn_relu_forward.1} parent=5 // pred_check_branch
      %206 = sbr.rel (%p203) target = $region12
    $region11: #{deep_nn_relu_forward.1} parent=5 // pred_region
      %s207 = ssub.s32 %s15, 1
      // Predicated region
      $region13: #{deep_nn_relu_forward.1} parent=11 // pred_check
        %p208 = pneg %p62
      $region14: #{deep_nn_relu_forward.1} parent=11 // pred_check_branch
        %210 = sbr.rel (%p208) target = $region16
      $region15: #{deep_nn_relu_forward.1} parent=11 // pred_region
        _
      $region16: #{deep_nn_relu_forward.1} parent=11 // pred_fallthru
        _
      // Predicated region
      $region17: #{deep_nn_relu_forward.1} parent=11 // pred_check
        %p211 = pneg %p83
      $region18: #{deep_nn_relu_forward.1} parent=11 // pred_check_branch
        %213 = sbr.rel (%p211) target = $region20
      $region19: #{deep_nn_relu_forward.1} parent=11 // pred_region
        _
      $region20: #{deep_nn_relu_forward.1} parent=11 // pred_fallthru
        _
      // Predicated region
      $region21: #{deep_nn_relu_forward.1} parent=11 // pred_check
        %p214 = pneg %p104
      $region22: #{deep_nn_relu_forward.1} parent=11 // pred_check_branch
        %216 = sbr.rel (%p214) target = $region24
      $region23: #{deep_nn_relu_forward.1} parent=11 // pred_region
        _
      $region24: #{deep_nn_relu_forward.1} parent=11 // pred_fallthru
        _
      // Predicated region
      $region25: #{deep_nn_relu_forward.1} parent=11 // pred_check
        %p217 = pneg %p125
      $region26: #{deep_nn_relu_forward.1} parent=11 // pred_check_branch
        %219 = sbr.rel (%p217) target = $region28
      $region27: #{deep_nn_relu_forward.1} parent=11 // pred_region
        _
      $region28: #{deep_nn_relu_forward.1} parent=11 // pred_fallthru
        _
      // Predicated region
      $region29: #{deep_nn_relu_forward.1} parent=11 // pred_check
        %p220 = pneg %p146
      $region30: #{deep_nn_relu_forward.1} parent=11 // pred_check_branch
        %222 = sbr.rel (%p220) target = $region32
      $region31: #{deep_nn_relu_forward.1} parent=11 // pred_region
        _
      $region32: #{deep_nn_relu_forward.1} parent=11 // pred_fallthru
        _
      // Predicated region
      $region33: #{deep_nn_relu_forward.1} parent=11 // pred_check
        %p223 = pneg %p167
      $region34: #{deep_nn_relu_forward.1} parent=11 // pred_check_branch
        %225 = sbr.rel (%p223) target = $region36
      $region35: #{deep_nn_relu_forward.1} parent=11 // pred_region
        _
      $region36: #{deep_nn_relu_forward.1} parent=11 // pred_fallthru
        _
    $region12: #{deep_nn_relu_forward.1} parent=5 // pred_fallthru
      _
    %p226 = scmp.lt.s32.totalorder %s15, 3
    // Predicated region
    $region37: #{deep_nn_relu_forward.1} parent=5 // pred_check
      %p227 = pneg %p226
    $region38: #{deep_nn_relu_forward.1} parent=5 // pred_check_branch
      %229 = sbr.rel (%p227) target = $region40
    $region39: #{deep_nn_relu_forward.1} parent=5 // pred_region
      // Predicated region
      $region41: #{deep_nn_relu_forward.1} parent=39 // pred_check
        %p230 = pneg %p35
      $region42: #{deep_nn_relu_forward.1} parent=39 // pred_check_branch
        %232 = sbr.rel (%p230) target = $region44
      $region43: #{deep_nn_relu_forward.1} parent=39 // pred_region
        %s233 = smul.u32 16, %s15
        %p234 = scmp.lt.s32.totalorder %s233, 47
        %s235 = scalar_select %p234, %s233, 47
        %s236 = smul.addr %s235, 4
        %s237 = scalar_lea.vmem %s0, %s236
        %s238 = smul.u32 16, %s15
      $region44: #{deep_nn_relu_forward.1} parent=39 // pred_fallthru
        _
    $region40: #{deep_nn_relu_forward.1} parent=5 // pred_fallthru
      _
    %p239 = scmp.le.s32.totalorder 1, %s15
    %p240 = scmp.lt.s32.totalorder %s15, 4
    %p241 = pnand %p239, %p240
    %p242 = pneg %p241
    // Predicated region
    $region45: #{deep_nn_relu_forward.1} parent=5 // pred_check
      _
    $region46: #{deep_nn_relu_forward.1} parent=5 // pred_check_branch
      %244 = sbr.rel (%p241) target = $region48
    $region47: #{deep_nn_relu_forward.1} parent=5 // pred_region
      %s245 = ssub.s32 %s15, 1
      %s246 = smul.u32 16, %s20
      %p247 = scmp.lt.s32.totalorder %s246, 47
      %s248 = scalar_select %p247, %s246, 47
      %s249 = smul.addr %s248, 4
      %s250 = scalar_lea.vmem %s0, %s249
      %p251 = pneg %p41
      %p252 = pneg %p38
      %p253 = pneg %p62
      %p254 = pneg %p59
      %p255 = pneg %p83
      %p256 = pneg %p80
      %p257 = pneg %p104
      %p258 = pneg %p101
      %p259 = pneg %p125
      %p260 = pneg %p122
      %p261 = pneg %p146
      %p262 = pneg %p143
      %p263 = pneg %p167
      %p264 = pneg %p164
      %p265 = pneg %p193
      %p266 = pneg %p190
      %p267 = scmp.lt.s32.totalorder %s20, 2
      %s268 = scalar_select %p267, %s20, 2
      %s269 = scalar_lea.vmem %s7, %s268
      %s270 = smul.u32 16, %s20
      %p271 = scmp.lt.s32.totalorder %s270, 47
      %s272 = scalar_select %p271, %s270, 47
      %s273 = smul.addr %s272, 4
      %s274 = scalar_lea.vmem %s0, %s273
      %s275 = smul.u32 16, %s20
      %p276 = scmp.lt.s32.totalorder %s20, 2
      %s277 = scalar_select %p276, %s20, 2
      %s278 = scalar_lea.vmem %s7, %s277
      %v280 = vld [vmem:[%s274] sm:$0xf]
      %v281 = vld [vmem:[%s274 + $0x4] sm:$0xf]
      %v282 = vld [vmem:[%s274 + $0x8] sm:$0xf]
      %v283 = vld [vmem:[%s274 + $0xc] sm:$0xf]
      %v284 = vld [vmem:[%s274 + $0x10] sm:$0xf]
      %v285 = vld [vmem:[%s274 + $0x14] sm:$0xf]
      %v286 = vld [vmem:[%s274 + $0x18] sm:$0xf]
      %v287 = vld [vmem:[%s274 + $0x1c] sm:$0xf]
      %v288 = vld [vmem:[%s274 + $0x20] sm:$0xf]
      %v289 = vld [vmem:[%s274 + $0x24] sm:$0xf]
      %v290 = vld [vmem:[%s274 + $0x28] sm:$0xf]
      %v291 = vld [vmem:[%s274 + $0x2c] sm:$0xf]
      %v292 = vld [vmem:[%s274 + $0x30] sm:$0xf]
      %v293 = vld [vmem:[%s274 + $0x34] sm:$0xf]
      %v294 = vld [vmem:[%s274 + $0x38] sm:$0xf]
      %v295 = vld [vmem:[%s274 + $0x3c] sm:$0xf]
      %v296 = vld [vmem:[%s1] sm:$0xf]
      %v297 = vld [vmem:[%s1 + $0x4] sm:$0xf]
      %v298 = vld [vmem:[%s1 + $0x8] sm:$0xf]
      %v299 = vld [vmem:[%s1 + $0xc] sm:$0xf]
      %v300 = vld [vmem:[%s2] sm:$0x1]
      %v302 = vlaneseq
      %v303 = vshrl.u32 %v302, 7
      %v304 = vsub.s32 0, %v303
      %v305 = vrot.slane %v300, %v304
      %v323 = vunpack.c.l.b16 %v280
      %v324 = vunpack.c.l.b16 %v281
      %v325 = vunpack.c.l.b16 %v282
      %v326 = vunpack.c.l.b16 %v283
      %v327 = vunpack.c.l.b16 %v284
      %v328 = vunpack.c.l.b16 %v285
      %v329 = vunpack.c.l.b16 %v286
      %v330 = vunpack.c.l.b16 %v287
      %v331 = vunpack.c.l.b16 %v288
      %v332 = vunpack.c.l.b16 %v289
      %v333 = vunpack.c.l.b16 %v290
      %v334 = vunpack.c.l.b16 %v291
      %v335 = vunpack.c.l.b16 %v292
      %v336 = vunpack.c.l.b16 %v293
      %v337 = vunpack.c.l.b16 %v294
      %v338 = vunpack.c.l.b16 %v295
      %v339 = vpack.c.b16 %v324, %v323
      %v340 = vpack.c.b16 %v326, %v325
      %v341 = vpack.c.b16 %v328, %v327
      %v342 = vpack.c.b16 %v330, %v329
      %v343 = vpack.c.b16 %v332, %v331
      %v344 = vpack.c.b16 %v334, %v333
      %v345 = vpack.c.b16 %v336, %v335
      %v346 = vpack.c.b16 %v338, %v337
      %v351 = vunpack.c.l.b16 %v296
      %v352 = vunpack.c.l.b16 %v297
      %v353 = vunpack.c.l.b16 %v298
      %v354 = vunpack.c.l.b16 %v299
      %v355 = vpack.c.b16 %v352, %v351
      %v356 = vpack.c.b16 %v354, %v353
      %vm359 = vcmask 261120
      %v361 = vsel %vm359, %v339, 0
      %v364 = vsel %vm359, %v340, 0
      %v367 = vsel %vm359, %v341, 0
      %v370 = vsel %vm359, %v342, 0
      %v373 = vsel %vm359, %v343, 0
      %v376 = vsel %vm359, %v344, 0
      %v379 = vsel %vm359, %v345, 0
      %v382 = vsel %vm359, %v346, 0
      %384 = vmatprep.subr.bf16.mxu0 0
      %385 = vmatpush1.bf16.msra.mxu0 %v355
      %386 = vmatprep.subr.bf16.mxu0 0
      %387 = vmatpush1.bf16.msra.mxu0 %v356
      %388 = vmatprep.subr.bf16.mxu0 0
      %389 = vmatpush1.bf16.msra.mxu0 0
      %390 = vmatprep.subr.bf16.mxu0 0
      %391 = vmatpush1.bf16.msra.mxu0 0
      %392 = vmatprep.subr.bf16.mxu0 0
      %393 = vmatpush1.bf16.msra.mxu0 0
      %394 = vmatprep.subr.bf16.mxu0 0
      %395 = vmatpush1.bf16.msra.mxu0 0
      %396 = vmatprep.subr.bf16.mxu0 0
      %397 = vmatpush1.bf16.msra.mxu0 0
      %398 = vmatprep.subr.bf16.mxu0 0
      %399 = vmatpush1.bf16.msra.mxu0 0
      %400 = vmatprep.subr.bf16.mxu0 0
      %401 = vmatpush1.bf16.msra.mxu0 0
      %402 = vmatprep.subr.bf16.mxu0 0
      %403 = vmatpush1.bf16.msra.mxu0 0
      %404 = vmatprep.subr.bf16.mxu0 0
      %405 = vmatpush1.bf16.msra.mxu0 0
      %406 = vmatprep.subr.bf16.mxu0 0
      %407 = vmatpush1.bf16.msra.mxu0 0
      %408 = vmatprep.subr.bf16.mxu0 0
      %409 = vmatpush1.bf16.msra.mxu0 0
      %410 = vmatprep.subr.bf16.mxu0 0
      %411 = vmatpush1.bf16.msra.mxu0 0
      %412 = vmatprep.subr.bf16.mxu0 0
      %413 = vmatpush1.bf16.msra.mxu0 0
      %414 = vmatprep.subr.bf16.mxu0 0
      %415 = vmatpush1.bf16.msra.mxu0 0
      %416 = vmatprep.mubr.bf16.mxu0 0
      %417 = vmatmul.mubr.bf16.gmra.mrb[0].mxu0 %v361
      %v418 = vpop.f32.mrb[0].mxu0
      %v419 = vadd.f32 %v305, %v418
      %v420 = vpop.f32.mrb[0].mxu0
      %v421 = vpop.f32.mrb[0].mxu0
      %v422 = vadd.f32 %v305, %v421
      %v423 = vpop.f32.mrb[0].mxu0
      %424 = vmatprep.mubr.bf16.mxu0 0
      %425 = vmatmul.mubr.bf16.gmra.mrb[0].mxu0 %v364
      %v426 = vpop.f32.mrb[0].mxu0
      %v427 = vadd.f32 %v305, %v426
      %v428 = vpop.f32.mrb[0].mxu0
      %v429 = vpop.f32.mrb[0].mxu0
      %v430 = vadd.f32 %v305, %v429
      %v431 = vpop.f32.mrb[0].mxu0
      %432 = vmatprep.mubr.bf16.mxu0 0
      %433 = vmatmul.mubr.bf16.gmra.mrb[0].mxu0 %v367
      %v434 = vpop.f32.mrb[0].mxu0
      %v435 = vadd.f32 %v305, %v434
      %v436 = vpop.f32.mrb[0].mxu0
      %v437 = vpop.f32.mrb[0].mxu0
      %v438 = vadd.f32 %v305, %v437
      %v439 = vpop.f32.mrb[0].mxu0
      %440 = vmatprep.mubr.bf16.mxu0 0
      %441 = vmatmul.mubr.bf16.gmra.mrb[0].mxu0 %v370
      %v442 = vpop.f32.mrb[0].mxu0
      %v443 = vadd.f32 %v305, %v442
      %v444 = vpop.f32.mrb[0].mxu0
      %v445 = vpop.f32.mrb[0].mxu0
      %v446 = vadd.f32 %v305, %v445
      %v447 = vpop.f32.mrb[0].mxu0
      %448 = vmatprep.mubr.bf16.mxu0 0
      %449 = vmatmul.mubr.bf16.gmra.mrb[0].mxu0 %v373
      %v450 = vpop.f32.mrb[0].mxu0
      %v451 = vadd.f32 %v305, %v450
      %v452 = vpop.f32.mrb[0].mxu0
      %v453 = vpop.f32.mrb[0].mxu0
      %v454 = vadd.f32 %v305, %v453
      %v455 = vpop.f32.mrb[0].mxu0
      %456 = vmatprep.mubr.bf16.mxu0 0
      %457 = vmatmul.mubr.bf16.gmra.mrb[0].mxu0 %v376
      %v458 = vpop.f32.mrb[0].mxu0
      %v459 = vadd.f32 %v305, %v458
      %v460 = vpop.f32.mrb[0].mxu0
      %v461 = vpop.f32.mrb[0].mxu0
      %v462 = vadd.f32 %v305, %v461
      %v463 = vpop.f32.mrb[0].mxu0
      %464 = vmatprep.mubr.bf16.mxu0 0
      %465 = vmatmul.mubr.bf16.gmra.mrb[0].mxu0 %v379
      %v466 = vpop.f32.mrb[0].mxu0
      %v467 = vadd.f32 %v305, %v466
      %v468 = vpop.f32.mrb[0].mxu0
      %v469 = vpop.f32.mrb[0].mxu0
      %v470 = vadd.f32 %v305, %v469
      %v471 = vpop.f32.mrb[0].mxu0
      %472 = vmatprep.mubr.bf16.mxu0 0
      %473 = vmatmul.mubr.bf16.gmra.mrb[0].mxu0 %v382
      %v474 = vpop.f32.mrb[0].mxu0
      %v475 = vadd.f32 %v305, %v474
      %v476 = vpop.f32.mrb[0].mxu0
      %v477 = vpop.f32.mrb[0].mxu0
      %v478 = vadd.f32 %v305, %v477
      %v479 = vpop.f32.mrb[0].mxu0
      %480 = vdwg.mxu0
      %v481 = vmax.f32 %v419, 0.0
      %v482 = vmax.f32 %v422, 0.0
      %v483 = vmax.f32 %v427, 0.0
      %v484 = vmax.f32 %v430, 0.0
      %v485 = vmax.f32 %v435, 0.0
      %v486 = vmax.f32 %v438, 0.0
      %v487 = vmax.f32 %v443, 0.0
      %v488 = vmax.f32 %v446, 0.0
      %v489 = vmax.f32 %v451, 0.0
      %v490 = vmax.f32 %v454, 0.0
      %v491 = vmax.f32 %v459, 0.0
      %v492 = vmax.f32 %v462, 0.0
      %v493 = vmax.f32 %v467, 0.0
      %v494 = vmax.f32 %v470, 0.0
      %v495 = vmax.f32 %v475, 0.0
      %v496 = vmax.f32 %v478, 0.0
      %v497 = vpack.c.bf16 %v482, %v481
      %v498 = vpack.c.bf16 %v484, %v483
      %v499 = vpack.c.bf16 %v486, %v485
      %v500 = vpack.c.bf16 %v488, %v487
      %v501 = vpack.c.bf16 %v490, %v489
      %v502 = vpack.c.bf16 %v492, %v491
      %v503 = vpack.c.bf16 %v494, %v493
      %v504 = vpack.c.bf16 %v496, %v495
      %v505 = vld [vmem:[%s3] sm:$0xf]
      %v506 = vld [vmem:[%s3 + $0x4] sm:$0xf]
      %v507 = vld [vmem:[%s3 + $0x8] sm:$0xf]
      %v508 = vld [vmem:[%s3 + $0xc] sm:$0xf]
      %v509 = vld [vmem:[%s4] sm:$0xff]
      %v510 = vld [vmem:[%s4 + $0x8] sm:$0xff]
      %v511 = vld [vmem:[%s4 + $0x10] sm:$0xff]
      %v512 = vld [vmem:[%s4 + $0x18] sm:$0xff]
      %514 = vset.pattern.permute.xlu0 0
      %515 = vperm.xlu0 %514, %v509
      %v516 = vpop.permute.xlu0 %515
      %519 = vset.pattern.permute.xlu0 0
      %520 = vperm.xlu0 %519, %v510
      %v521 = vpop.permute.xlu0 %520
      %524 = vset.pattern.permute.xlu0 0
      %525 = vperm.xlu0 %524, %v511
      %v526 = vpop.permute.xlu0 %525
      %529 = vset.pattern.permute.xlu0 0
      %530 = vperm.xlu0 %529, %v512
      %v531 = vpop.permute.xlu0 %530
      %v537 = vunpack.c.l.b16 %v505
      %v538 = vunpack.c.l.b16 %v506
      %v539 = vunpack.c.l.b16 %v507
      %v540 = vunpack.c.l.b16 %v508
      %v541 = vpack.c.b16 %v538, %v537
      %v542 = vpack.c.b16 %v540, %v539
      %vm543 = vcmask 523264
      %v545 = vsel %vm543, %v541, 0
      %v548 = vsel %vm543, %v542, 0
      %v551 = vsel %vm543, %v497, 0
      %v554 = vsel %vm543, %v498, 0
      %v557 = vsel %vm543, %v499, 0
      %v560 = vsel %vm543, %v500, 0
      %v563 = vsel %vm543, %v501, 0
      %v566 = vsel %vm543, %v502, 0
      %v569 = vsel %vm543, %v503, 0
      %v572 = vsel %vm543, %v504, 0
      %574 = vmatprep.subr.bf16.mxu0 0
      %575 = vmatpush1.bf16.xpose.msra.mxu0 %v551
      %576 = vmatprep.subr.bf16.mxu0 0
      %577 = vmatpush1.bf16.xpose.msra.mxu0 %v554
      %578 = vmatprep.subr.bf16.mxu0 0
      %579 = vmatpush1.bf16.xpose.msra.mxu0 %v557
      %580 = vmatprep.subr.bf16.mxu0 0
      %581 = vmatpush1.bf16.xpose.msra.mxu0 %v560
      %582 = vmatprep.subr.bf16.mxu0 0
      %583 = vmatpush1.bf16.xpose.msra.mxu0 %v563
      %584 = vmatprep.subr.bf16.mxu0 0
      %585 = vmatpush1.bf16.xpose.msra.mxu0 %v566
      %586 = vmatprep.subr.bf16.mxu0 0
      %587 = vmatpush1.bf16.xpose.msra.mxu0 %v569
      %588 = vmatprep.subr.bf16.mxu0 0
      %589 = vmatpush1.bf16.xpose.msra.mxu0 %v572
      %590 = vmatprep.subr.bf16.mxu0 0
      %591 = vmatpush1.bf16.xpose.msra.mxu0 0
      %592 = vmatprep.subr.bf16.mxu0 0
      %593 = vmatpush1.bf16.xpose.msra.mxu0 0
      %594 = vmatprep.subr.bf16.mxu0 0
      %595 = vmatpush1.bf16.xpose.msra.mxu0 0
      %596 = vmatprep.subr.bf16.mxu0 0
      %597 = vmatpush1.bf16.xpose.msra.mxu0 0
      %598 = vmatprep.subr.bf16.mxu0 0
      %599 = vmatpush1.bf16.xpose.msra.mxu0 0
      %600 = vmatprep.subr.bf16.mxu0 0
      %601 = vmatpush1.bf16.xpose.msra.mxu0 0
      %602 = vmatprep.subr.bf16.mxu0 0
      %603 = vmatpush1.bf16.xpose.msra.mxu0 0
      %604 = vmatprep.subr.bf16.mxu0 0
      %605 = vmatpush1.bf16.xpose.msra.mxu0 0
      %606 = vmatprep.mubr.bf16.mxu0 0
      %607 = vmatmul.mubr.bf16.gmra.mrb[0].mxu0 %v545
      %v608 = vpop.f32.mrb[0].mxu0
      %v609 = vadd.f32 %v516, %v608
      %v610 = vpop.f32.mrb[0].mxu0
      %v611 = vpop.f32.mrb[0].mxu0
      %v612 = vadd.f32 %v521, %v611
      %v613 = vpop.f32.mrb[0].mxu0
      %614 = vmatprep.mubr.bf16.mxu0 0
      %615 = vmatmul.mubr.bf16.gmra.mrb[0].mxu0 %v548
      %v616 = vpop.f32.mrb[0].mxu0
      %v617 = vadd.f32 %v526, %v616
      %v618 = vpop.f32.mrb[0].mxu0
      %v619 = vpop.f32.mrb[0].mxu0
      %v620 = vadd.f32 %v531, %v619
      %v621 = vpop.f32.mrb[0].mxu0
      %622 = vdwg.mxu0
      %v623 = vmax.f32 %v609, 0.0
      %v624 = vmax.f32 %v612, 0.0
      %v625 = vmax.f32 %v617, 0.0
      %v626 = vmax.f32 %v620, 0.0
      %v627 = vld [vmem:[%s5] sm:$0xff]
      %v628 = vld [vmem:[%s5 + $0x8] sm:$0xff]
      %v629 = vld [vmem:[%s5 + $0x10] sm:$0xff]
      %v630 = vld [vmem:[%s5 + $0x18] sm:$0xff]
      %632 = vset.pattern.permute.xlu0 0
      %633 = vperm.xlu0 %632, %v627
      %v634 = vpop.permute.xlu0 %633
      %637 = vset.pattern.permute.xlu0 0
      %638 = vperm.xlu0 %637, %v628
      %v639 = vpop.permute.xlu0 %638
      %642 = vset.pattern.permute.xlu0 0
      %643 = vperm.xlu0 %642, %v629
      %v644 = vpop.permute.xlu0 %643
      %647 = vset.pattern.permute.xlu0 0
      %648 = vperm.xlu0 %647, %v630
      %v649 = vpop.permute.xlu0 %648
      %v651 = vmul.f32 %v623, %v634
      %v652 = vmul.f32 %v624, %v639
      %v653 = vmul.f32 %v625, %v644
      %v654 = vmul.f32 %v626, %v649
      %v655 = vadd.f32 %v651, %v652
      %v656 = vadd.f32 %v655, %v653
      %v657 = vadd.f32 %v656, %v654
      %v658 = vrot.slane %v657, 4
      %v659 = vadd.f32 %v657, %v658
      %v660 = vrot.slane %v659, 2
      %v661 = vadd.f32 %v659, %v660
      %v662 = vrot.slane %v661, 1
      %v663 = vadd.f32 %v661, %v662
      %v664 = vld [vmem:[#allocation2] sm:$0x1]
      %666 = vset.pattern.permute.xlu0 0
      %667 = vperm.xlu0 %666, %v664
      %v668 = vpop.permute.xlu0 %667
      %v670 = vlaneseq
      %v671 = vshrl.u32 %v670, 7
      %v672 = vsub.s32 0, %v671
      %v673 = vrot.slane %v668, %v672
      %v674 = vadd.f32 %v663, %v673
      %675 = vst [vmem:[%s278] sm:$0x1] %v674
      %p676 = scmp.lt.s32.totalorder %s20, 2
      %s677 = scalar_select %p676, %s20, 2
      %s678 = scalar_lea.vmem %s7, %s677
      // Predicated region
      $region49: #{deep_nn_relu_forward.1} parent=47 // pred_check
        %p679 = pneg %p190
      $region50: #{deep_nn_relu_forward.1} parent=47 // pred_check_branch
        %681 = sbr.rel (%p679) target = $region52
      $region51: #{deep_nn_relu_forward.1} parent=47 // pred_region
        _
      $region52: #{deep_nn_relu_forward.1} parent=47 // pred_fallthru
        _
    $region48: #{deep_nn_relu_forward.1} parent=5 // pred_fallthru
      _
    %p682 = scmp.le.s32.totalorder 2, %s15
    // Predicated region
    $region53: #{deep_nn_relu_forward.1} parent=5 // pred_check
      %p683 = pneg %p682
    $region54: #{deep_nn_relu_forward.1} parent=5 // pred_check_branch
      %685 = sbr.rel (%p683) target = $region56
    $region55: #{deep_nn_relu_forward.1} parent=5 // pred_region
      %s686 = ssub.s32 %s15, 2
      // Predicated region
      $region57: #{deep_nn_relu_forward.1} parent=55 // pred_check
        %p687 = pneg %p196
      $region58: #{deep_nn_relu_forward.1} parent=55 // pred_check_branch
        %689 = sbr.rel (%p687) target = $region60
      $region59: #{deep_nn_relu_forward.1} parent=55 // pred_region
        %p690 = scmp.lt.s32.totalorder %s21, 2
        %s691 = scalar_select %p690, %s21, 2
        %s692 = scalar_lea.vmem %s7, %s691
      $region60: #{deep_nn_relu_forward.1} parent=55 // pred_fallthru
        _
    $region56: #{deep_nn_relu_forward.1} parent=5 // pred_fallthru
      _
  $region6: #{deep_nn_relu_forward.1} parent=0 // loop_footer
    %s19 = sadd.s32 1, %s15
  $region7: #{deep_nn_relu_forward.1} parent=0 // loop_footer_branch
    %14 = sbr.rel target = $region3
  $region8: #{deep_nn_relu_forward.1} parent=0 // loop_exit
    _

</llo_original>
